<compile_context>
chip_gen: v7x
topology: tpu7x:2x2x1
jax: 0.10.0
libtpu: 0.0.40
codegen_flags: <defaults>
</compile_context>

<pallas_src>
import functools
import math

import jax
import jax.numpy as jnp
from jax import lax
from jax.experimental import pallas as pl
from jax.experimental.pallas import tpu as pltpu


def _rmsnorm_kernel(x_ref, w_ref, o_ref, *, eps: float, inv_dim: float,
                    fused_f32: bool):
    # x_ref: (block_rows, D) tile; w_ref: (1, D) resident weight; o_ref: (block_rows, D)
    x_f32 = x_ref[...].astype(jnp.float32)                       # x.float()
    # mean(x^2, -1) == sum(x^2, -1) * (1/D); 1/D folded at trace time.
    ms = jnp.sum(x_f32 * x_f32, axis=-1, keepdims=True) * inv_dim
    inv = lax.rsqrt(ms + eps)                                     # EUP slot
    if fused_f32:
        # Weight was pre-cast to f32 in the wrapper: single multiply chain and a
        # single final cast. (Rounding order differs slightly from PyTorch.)
        o_ref[...] = (x_f32 * inv * w_ref[...]).astype(o_ref.dtype)
    else:
        # Exact PyTorch ordering: .type_as(x) then * weight.
        norm = (x_f32 * inv).astype(x_ref.dtype)
        o_ref[...] = (norm * w_ref[...]).astype(o_ref.dtype)


def _tpu_vmem_and_cores():
    """Best-effort per-chip VMEM capacity and TensorCore count."""
    vmem_cap = 128 << 20
    try:
        info = pltpu.get_tpu_info()
        vmem_cap = int(info.vmem_capacity_bytes)
    except Exception:
        pass
    # Heuristic: chips reporting <= 96 MiB VMEM per core are v7x-like (2 TCs);
    # 128 MiB chips (v5e/v6e) have a single TensorCore.
    num_tc = 2 if vmem_cap <= (96 << 20) else 1
    return vmem_cap, num_tc


def rmsnorm(x: jax.Array, weight: jax.Array, eps: float = 1e-6,
            block_rows: int | None = None,
            fused_f32_weight: bool = False) -> jax.Array:
    """RMSNorm over the last axis of `x`, matching the PyTorch module."""
    orig_shape = x.shape
    dim = orig_shape[-1]
    assert weight.shape == (dim,), (weight.shape, dim)
    rows = int(math.prod(orig_shape[:-1])) if len(orig_shape) > 1 else 1

    vmem_cap, num_tc = _tpu_vmem_and_cores()

    x2d = x.reshape(rows, dim)
    if fused_f32_weight:
        # Pre-cast once in the wrapper so the kernel does no per-tile weight cast.
        w2d = weight.astype(jnp.float32).reshape(1, dim)
        out_dtype = jnp.promote_types(x.dtype, weight.dtype)
    else:
        w2d = weight.reshape(1, dim)
        out_dtype = jnp.promote_types(x.dtype, weight.dtype)

    x_bytes = jnp.dtype(x.dtype).itemsize
    o_bytes = jnp.dtype(out_dtype).itemsize
    w_bytes = jnp.dtype(w2d.dtype).itemsize

    if block_rows is None:
        # Pipeline-buffer budget per chip generation.
        if vmem_cap <= (96 << 20):          # v7x-like: 64 MiB per TC
            pipeline_budget = 14 << 20
        else:                               # v5e / v6e: 128 MiB
            pipeline_budget = 32 << 20
        # Double-buffered in/out tiles + f32 temporaries (x_f32, x*x, norm).
        per_row_bytes = dim * (2 * (x_bytes + o_bytes) + 3 * 4)
        br = max(1, pipeline_budget // per_row_bytes)
        # On multi-TC chips keep >= ~2 blocks per core so "parallel" grid
        # sharding gives both TensorCores work.
        if num_tc > 1 and rows > 8:
            br = min(br, max(8, pl.cdiv(rows, 2 * num_tc)))
        br = int(min(br, 8192, rows))
        if br < rows:
            br = max(8, (br // 8) * 8)      # sublane-aligned when row-tiling
        block_rows = br
    block_rows = int(min(block_rows, rows))

    grid = (pl.cdiv(rows, block_rows),)

    # VMEM limit: double-buffered in/out tiles + f32 temporaries + weight +
    # headroom, capped per generation (<=40 MiB on v7x-like 64 MiB chips).
    tile_elems = block_rows * dim
    vmem_limit = int(2 * tile_elems * (x_bytes + o_bytes)
                     + 3 * tile_elems * 4
                     + 2 * dim * w_bytes
                     + (2 << 20))
    if vmem_cap <= (96 << 20):
        cap = 40 << 20
    else:
        cap = min(vmem_cap - (16 << 20), 100 << 20)
    vmem_limit = max(16 << 20, min(vmem_limit, cap))

    cost = pl.CostEstimate(
        flops=4 * rows * dim,               # square, reduce-add, normalize, weight mul
        transcendentals=rows,               # one rsqrt per row
        bytes_accessed=rows * dim * (x_bytes + o_bytes) + dim * w_bytes,
    )

    out = pl.pallas_call(
        functools.partial(_rmsnorm_kernel, eps=eps, inv_dim=1.0 / dim,
                          fused_f32=fused_f32_weight),
        out_shape=jax.ShapeDtypeStruct((rows, dim), out_dtype),
        grid_spec=pltpu.PrefetchScalarGridSpec(
            num_scalar_prefetch=0,
            grid=grid,
            in_specs=[
                pl.BlockSpec((block_rows, dim), lambda i: (i, 0)),
                pl.BlockSpec((1, dim), lambda i: (0, 0)),   # weight resident
            ],
            out_specs=pl.BlockSpec((block_rows, dim), lambda i: (i, 0)),
        ),
        compiler_params=pltpu.CompilerParams(
            dimension_semantics=("parallel",),
            vmem_limit_bytes=vmem_limit,
        ),
        cost_estimate=cost,
    )(x2d, w2d)

    return out.reshape(orig_shape[:-1] + (dim,)).astype(out_dtype).reshape(orig_shape) \
        if out_dtype == x.dtype else out.reshape(orig_shape[:-1] + (dim,))


def rmsnorm_ref(x, weight, eps=1e-6):
    x_f32 = x.astype(jnp.float32)
    norm = x_f32 * lax.rsqrt(jnp.mean(x_f32 * x_f32, axis=-1, keepdims=True) + eps)
    return norm.astype(x.dtype) * weight


if __name__ == "__main__":
    key = jax.random.PRNGKey(0)

    # Small demo shapes consistent with the module: (batch, seq, dim)
    batch, seq, dim = 2, 8, 32
    x = jax.random.normal(key, (batch, seq, dim), dtype=jnp.float32)
    weight = jnp.ones((dim,), dtype=jnp.float32)   # nn.Parameter(torch.ones(dim))

    out = jax.block_until_ready(rmsnorm(x, weight, eps=1e-6))
    ref = rmsnorm_ref(x, weight, eps=1e-6)
    assert out.shape == x.shape, (out.shape, x.shape)
    assert jnp.allclose(out, ref, atol=1e-5, rtol=1e-5), "mismatch vs reference"

    # Lane-dense dim (multiple of 128) with rows NOT a multiple of block_rows,
    # exercising the boundary-masked tail block and the auto-sizer path.
    k1, k2 = jax.random.split(key)
    x2 = jax.random.normal(k1, (3, 40, 256), dtype=jnp.float32)
    w2 = 1.0 + 0.1 * jax.random.normal(k2, (256,), dtype=jnp.float32)
    out2 = jax.block_until_ready(rmsnorm(x2, w2, eps=1e-6, block_rows=16))
    ref2 = rmsnorm_ref(x2, w2, eps=1e-6)
    assert out2.shape == x2.shape
    assert jnp.allclose(out2, ref2, atol=1e-5, rtol=1e-5), "mismatch vs reference (tail block)"

    # Fused f32-weight path (single final cast); matches within tolerance.
    out3 = jax.block_until_ready(rmsnorm(x2, w2, eps=1e-6, fused_f32_weight=True))
    assert jnp.allclose(out3, ref2, atol=1e-4, rtol=1e-4), "mismatch vs reference (fused)"

    print("KERNEL_OK")
</pallas_src>

<mosaic_0001>
module attributes {stable_mosaic.version = 11 : i64} {
  func.func @_rmsnorm_kernel(%arg0: i32, %arg1: memref<16x32xf32, #tpu.memory_space<vmem>>, %arg2: memref<1x32xf32, #tpu.memory_space<vmem>>, %arg3: memref<16x32xf32, #tpu.memory_space<vmem>>) attributes {dimension_semantics = [#tpu.dimension_semantics<parallel>], iteration_bounds = array<i64: 1>, scalar_prefetch = 0 : i64, scratch_operands = 0 : i64, tpu.core_type = #tpu.core_type<tc>, window_params = [{transform_indices = @transform_0, window_bounds = array<i64: 16, 32>}, {pipeline_mode = #tpu.pipeline_mode<synchronous>, transform_indices = @transform_1, window_bounds = array<i64: 1, 32>}, {transform_indices = @transform_2, window_bounds = array<i64: 16, 32>}]} {
    %c0 = arith.constant 0 : index
    %c0_0 = arith.constant 0 : index
    %0 = vector.load %arg1[%c0, %c0_0] : memref<16x32xf32, #tpu.memory_space<vmem>>, vector<16x32xf32>
    %1 = arith.mulf %0, %0 : vector<16x32xf32>
    %cst = arith.constant dense<0.000000e+00> : vector<16xf32>
    %2 = vector.multi_reduction <add>, %1, %cst [1] : vector<16x32xf32> to vector<16xf32>
    %3 = vector.shape_cast %2 : vector<16xf32> to vector<16x1xf32>
    %cst_1 = arith.constant 3.125000e-02 : f32
    %4 = vector.broadcast %cst_1 : f32 to vector<16x1xf32>
    %5 = arith.mulf %3, %4 : vector<16x1xf32>
    %cst_2 = arith.constant 9.99999997E-7 : f32
    %6 = vector.broadcast %cst_2 : f32 to vector<16x1xf32>
    %7 = arith.addf %5, %6 : vector<16x1xf32>
    %8 = math.rsqrt %7 : vector<16x1xf32>
    %9 = vector.broadcast %8 : vector<16x1xf32> to vector<16x32xf32>
    %10 = arith.mulf %0, %9 : vector<16x32xf32>
    %c0_3 = arith.constant 0 : index
    %c0_4 = arith.constant 0 : index
    %11 = vector.load %arg2[%c0_3, %c0_4] : memref<1x32xf32, #tpu.memory_space<vmem>>, vector<1x32xf32>
    %12 = vector.broadcast %11 : vector<1x32xf32> to vector<16x32xf32>
    %13 = arith.mulf %10, %12 : vector<16x32xf32>
    %c0_5 = arith.constant 0 : index
    %c0_6 = arith.constant 0 : index
    %14 = vector.load %arg3[%c0_5, %c0_6] : memref<16x32xf32, #tpu.memory_space<vmem>>, vector<16x32xf32>
    tpu.vector_store %arg3[%c0_5, %c0_6], %13 {strides = array<i32>} : memref<16x32xf32, #tpu.memory_space<vmem>>, vector<16x32xf32>,
    return
  }
  func.func @transform_0(%arg0: i32) -> (i32, i32) {
    %c0_i32 = arith.constant 0 : i32
    %c0_i32_0 = arith.constant 0 : i32
    return %arg0, %c0_i32 : i32, i32
  }
  func.func @transform_1(%arg0: i32) -> (i32, i32) {
    %c0_i32 = arith.constant 0 : i32
    %c0_i32_0 = arith.constant 0 : i32
    %c0_i32_1 = arith.constant 0 : i32
    return %c0_i32, %c0_i32_0 : i32, i32
  }
  func.func @transform_2(%arg0: i32) -> (i32, i32) {
    %c0_i32 = arith.constant 0 : i32
    %c0_i32_0 = arith.constant 0 : i32
    return %arg0, %c0_i32 : i32, i32
  }
}

</mosaic_0001>

<llo_original>
// kernel: tpu_custom_call.1
$region0: #{tpu_custom_call.1}
  #allocation0 [shape = 'u32[]', space=smem, size = 0x4, offset = 0x4, fixed_abs, tag = 'smem constant byte address 0x4 - core index']
  #allocation1 [shape = 'u32[144,128]{1,0:T(1,128)}', space=vmem, size = 0x12000, scoped, tag = 'internal scratch']
  %s0 = inlined_call_operand.hbm [shape: f32[16,32], index: 0, kind: input, shape index: {}]
  %s1 = inlined_call_operand.vmem [shape: f32[1,32], index: 1, kind: input, shape index: {}]
  %s2 = inlined_call_operand.hbm [shape: f32[16,32], index: 2, kind: output, shape index: {}]
  %s3 = sld [smem:[#allocation0]]
  $region22: #{tpu_custom_call.1} parent=0
    _
  %s5 = ssub.s32 1, %s3
  %s6 = scalar_select 0, %s5, %s3
  $region1: #{tpu_custom_call.1} parent=0
    #allocation2 [shape = 'u8[8192]{0}', space=vmem, size = 0x2000, scoped, tag = 'input window, operand 0, single buffered']
    #allocation3 [shape = 's32[1]{0}', space=sflag, size = 0x4, scoped, tag = 'scoped memory for tpu_custom_call.1']
    #allocation4 [shape = 's32[1]{0}', space=sflag, size = 0x4, scoped, tag = 'scoped memory for tpu_custom_call.1']
    #allocation5 [shape = 'u8[8192]{0}', space=vmem, size = 0x2000, scoped, tag = 'output window, operand 0, single buffered']
    %7 = vsyncpa [#allocation3], 0
    %8 = vsyncpa [#allocation4], 0
    // Predicated region
    $region2: #{tpu_custom_call.1} parent=1 // pred_check
      _
    $region3: #{tpu_custom_call.1} parent=1 // pred_check_branch
      %10 = sbr.rel (0) target = $region5
    $region4: #{tpu_custom_call.1} parent=1 // pred_region
      %s12 = ssub.s32 256, 256
      %13 = vsyncadd [#allocation3], %s12
      %s14 = sshll.u32 [#allocation2], 4
      %s15 = int_to_ptr.vmem [resolvable:$true] %s14
      %20 = dma.hbm_to_vmem [thread:$0]  %s0, 256, %s15, [#allocation3], 128, 128, 8
    $region5: #{tpu_custom_call.1} parent=1 // pred_fallthru
      _
    // Predicated region
    $region6: #{tpu_custom_call.1} parent=1 // pred_check
      _
    $region7: #{tpu_custom_call.1} parent=1 // pred_check_branch
      %22 = sbr.rel (0) target = $region9
    $region8: #{tpu_custom_call.1} parent=1 // pred_region
      _
    $region9: #{tpu_custom_call.1} parent=1 // pred_fallthru
      _
    // Predicated region
    $region10: #{tpu_custom_call.1} parent=1 // pred_check
      _
    $region11: #{tpu_custom_call.1} parent=1 // pred_check_branch
      %24 = sbr.rel (0) target = $region13
    $region12: #{tpu_custom_call.1} parent=1 // pred_region
      %25 = dma.done [#allocation3], 256
    $region13: #{tpu_custom_call.1} parent=1 // pred_fallthru
      _
    %v26 = vld [vmem:[#allocation2] sm:$0xff]
    %v27 = vld [vmem:[#allocation2 + $0x8] sm:$0xff]
    %v28 = vmul.f32 %v26, %v26
    %v29 = vmul.f32 %v27, %v27
    %vm30 = vcmask 261120
    %v31 = vsel %vm30, %v28, 0.0
    %32 = vadd.xlane.f32.xlu0 %v31
    %v33 = vpop.xlane.xlu0 %32
    %v34 = vsel %vm30, %v29, 0.0
    %35 = vadd.xlane.f32.xlu0 %v34
    %v36 = vpop.xlane.xlu0 %35
    %v37 = vmul.f32 %v33, 0.03125
    %v38 = vmul.f32 %v36, 0.03125
    %v39 = vadd.f32 %v37, 1e-06
    %v40 = vadd.f32 %v38, 1e-06
    %v41 = vrsqrt.pop %v39
    %v42 = vrsqrt.pop %v40
    %v43 = vmul.f32 %v26, %v41
    %v44 = vmul.f32 %v27, %v42
    %v45 = vld [vmem:[%s1] sm:$0x1]
    %v47 = vlaneseq
    %v48 = vshrl.u32 %v47, 7
    %v49 = vsub.s32 0, %v48
    %v50 = vrot.slane %v45, %v49
    %v52 = vmul.f32 %v43, %v50
    %v53 = vmul.f32 %v44, %v50
    %54 = vst.msk [vmem:[#allocation5] sm:$0xff] %vm30, %v52
    %55 = vst.msk [vmem:[#allocation5 + $0x8] sm:$0xff] %vm30, %v53
    // Predicated region
    $region14: #{tpu_custom_call.1} parent=1 // pred_check
      _
    $region15: #{tpu_custom_call.1} parent=1 // pred_check_branch
      %57 = sbr.rel (0) target = $region17
    $region16: #{tpu_custom_call.1} parent=1 // pred_region
      %s59 = ssub.s32 256, 256
      %60 = vsyncadd [#allocation4], %s59
      %s61 = sshll.u32 [#allocation5], 4
      %s62 = int_to_ptr.vmem [resolvable:$true] %s61
      %67 = dma.vmem_to_hbm [thread:$0]  %s62, 256, %s2, [#allocation4], 128, 128, 8
    $region17: #{tpu_custom_call.1} parent=1 // pred_fallthru
      _
    // Predicated region
    $region18: #{tpu_custom_call.1} parent=1 // pred_check
      _
    $region19: #{tpu_custom_call.1} parent=1 // pred_check_branch
      %69 = sbr.rel (0) target = $region21
    $region20: #{tpu_custom_call.1} parent=1 // pred_region
      %70 = dma.done [#allocation4], 256
    $region21: #{tpu_custom_call.1} parent=1 // pred_fallthru
      _
    %71 = vsyncpa [#allocation3], 1
    %72 = vsyncpa [#allocation4], 1

</llo_original>
